<compile_context>
chip_gen: v5e
topology: v5e:2x2
jax: 0.10.0
libtpu: 0.0.40
codegen_flags: <defaults>
</compile_context>

<pallas_src>
import functools

import jax
import jax.numpy as jnp
from jax.experimental import pallas as pl
from jax.experimental.pallas import tpu as pltpu

LANE = 128
SUB = 8                  # f32 sublane tile
MAX_BLOCK_ROWS = 2048    # 2048 * 128 * 4B = 1 MiB per f32 input block
EPS = 1e-7
X_PAD = -1e4             # sigmoid(X_PAD) == 0 and log1p(exp(X_PAD)) == 0 in f32


def _combined_loss_kernel(x_ref, y_ref, o_ref, tp_acc, den_acc, bce_acc,
                          *, block_rows, valid_rows, inv_n):
    i = pl.program_id(0)

    @pl.when(i == 0)
    def _init():
        tp_acc[...] = jnp.zeros_like(tp_acc)
        den_acc[...] = jnp.zeros_like(den_acc)
        bce_acc[...] = jnp.zeros_like(bce_acc)

    x = x_ref[...].astype(jnp.float32)   # logits
    y = y_ref[...].astype(jnp.float32)   # targets in [0, 1]

    # One EUP exp shared by sigmoid and the stable softplus term.
    e = jnp.exp(-jnp.abs(x))
    s = 1.0 / (1.0 + e)
    p = jnp.where(x >= 0.0, s, e * s)                   # == sigmoid(x)
    bce = jnp.maximum(x, 0.0) - x * y + jnp.log1p(e)    # stable BCE-with-logits

    tp = p * y        # soft true positives
    den = p + y       # dice denominator contribution

    if valid_rows % block_rows != 0:
        # Last block extends past the array; zero the out-of-range rows.
        row = i * block_rows + jax.lax.broadcasted_iota(
            jnp.int32, (block_rows, LANE), 0)
        valid = row < valid_rows
        zero = jnp.float32(0.0)
        tp = jnp.where(valid, tp, zero)
        den = jnp.where(valid, den, zero)
        bce = jnp.where(valid, bce, zero)

    # Per-block partial reduction as a VALU vreg tree; keep accumulators
    # vreg-shaped and defer the cross-lane reduction to the finalize step.
    g = block_rows // SUB
    tp_acc[...] += tp.reshape(g, SUB, LANE).sum(axis=0)
    den_acc[...] += den.reshape(g, SUB, LANE).sum(axis=0)
    bce_acc[...] += bce.reshape(g, SUB, LANE).sum(axis=0)

    @pl.when(i == pl.num_programs(0) - 1)
    def _finalize():
        tp_s = jnp.sum(tp_acc[...], keepdims=True)     # (1, 1)
        den_s = jnp.sum(den_acc[...], keepdims=True)   # (1, 1)
        bce_s = jnp.sum(bce_acc[...], keepdims=True)   # (1, 1)
        f1 = (2.0 * tp_s) / (den_s + jnp.float32(EPS))
        o_ref[...] = bce_s * jnp.float32(inv_n) + (1.0 - f1)


def combined_loss(inputs, targets):
    """inputs: logits, targets: same shape, values in [0,1]. Returns scalar."""
    assert inputs.shape == targets.shape
    n = inputs.size

    x = inputs.reshape(-1)
    y = targets.reshape(-1)

    # Pad the tail (if any) to a multiple of 8*128. Pad values contribute
    # exactly zero to every sum, so no validity-mask stream is needed. For the
    # common case (n divisible by 1024) this is a pure reshape, no copy.
    pad = (-n) % (SUB * LANE)
    if pad:
        x = jnp.concatenate([x, jnp.full((pad,), X_PAD, dtype=x.dtype)])
        y = jnp.concatenate([y, jnp.zeros((pad,), dtype=y.dtype)])

    rows = (n + pad) // LANE
    x = x.reshape(rows, LANE)
    y = y.reshape(rows, LANE)

    block_rows = min(MAX_BLOCK_ROWS, rows)   # rows is a multiple of 8
    grid = (pl.cdiv(rows, block_rows),)

    kernel = functools.partial(
        _combined_loss_kernel,
        block_rows=block_rows,
        valid_rows=rows,
        inv_n=1.0 / float(n),
    )

    out = pl.pallas_call(
        kernel,
        out_shape=jax.ShapeDtypeStruct((1, 1), jnp.float32),
        grid_spec=pltpu.PrefetchScalarGridSpec(
            num_scalar_prefetch=0,
            grid=grid,
            in_specs=[
                pl.BlockSpec((block_rows, LANE), lambda i: (i, 0)),  # logits
                pl.BlockSpec((block_rows, LANE), lambda i: (i, 0)),  # targets
            ],
            out_specs=pl.BlockSpec((1, 1), lambda i: (0, 0)),
            scratch_shapes=[
                pltpu.VMEM((SUB, LANE), jnp.float32),  # sum(p * y)
                pltpu.VMEM((SUB, LANE), jnp.float32),  # sum(p) + sum(y)
                pltpu.VMEM((SUB, LANE), jnp.float32),  # sum(bce)
            ],
        ),
        compiler_params=pltpu.CompilerParams(
            dimension_semantics=("arbitrary",)),
    )(x, y)
    return out[0, 0]


def _reference(inputs, targets):
    x = inputs.astype(jnp.float32)
    y = targets.astype(jnp.float32)
    p = jax.nn.sigmoid(x)
    tp = jnp.sum(p * y)
    f1 = 2.0 * tp / (jnp.sum(p) + jnp.sum(y) + EPS)
    dice = 1.0 - f1
    bce = jnp.mean(jnp.maximum(x, 0.0) - x * y + jnp.log1p(jnp.exp(-jnp.abs(x))))
    return bce + dice


if __name__ == "__main__":
    key = jax.random.PRNGKey(0)
    k1, k2 = jax.random.split(key)
    B, C, H, W = 2, 4, 16, 16
    inputs = jax.random.normal(k1, (B, C, H, W), dtype=jnp.float32)       # logits
    targets = (jax.random.uniform(k2, (B, C, H, W)) > 0.5).astype(jnp.float32)

    loss = jax.block_until_ready(combined_loss(inputs, targets))
    ref = _reference(inputs, targets)
    assert jnp.allclose(loss, ref, rtol=1e-5, atol=1e-5), (loss, ref)
    print("KERNEL_OK")
</pallas_src>

<mosaic_0001>
module attributes {stable_mosaic.version = 11 : i64} {
  func.func @_combined_loss_kernel(%arg0: i32, %arg1: memref<16x128xf32, #tpu.memory_space<vmem>>, %arg2: memref<16x128xf32, #tpu.memory_space<vmem>>, %arg3: memref<1x1xf32, #tpu.memory_space<vmem>>, %arg4: memref<8x128xf32, #tpu.memory_space<vmem>>, %arg5: memref<8x128xf32, #tpu.memory_space<vmem>>, %arg6: memref<8x128xf32, #tpu.memory_space<vmem>>) attributes {dimension_semantics = [#tpu.dimension_semantics<arbitrary>], iteration_bounds = array<i64: 1>, scalar_prefetch = 0 : i64, scratch_operands = 3 : i64, tpu.core_type = #tpu.core_type<tc>, window_params = [{transform_indices = @transform_0, window_bounds = array<i64: 16, 128>}, {transform_indices = @transform_1, window_bounds = array<i64: 16, 128>}, {pipeline_mode = #tpu.pipeline_mode<synchronous>, transform_indices = @transform_2, window_bounds = array<i64: 1, 1>}]} {
    %c0_i32 = arith.constant 0 : i32
    %0 = arith.cmpi eq, %arg0, %c0_i32 : i32
    %1 = arith.extui %0 : i1 to i32
    %c0_i32_0 = arith.constant 0 : i32
    %2 = arith.cmpi ne, %1, %c0_i32_0 : i32
    scf.if %2 {
      %cst_25 = arith.constant 0.000000e+00 : f32
      %43 = vector.broadcast %cst_25 : f32 to vector<8x128xf32>
      %c0_26 = arith.constant 0 : index
      %c0_27 = arith.constant 0 : index
      %44 = vector.load %arg4[%c0_26, %c0_27] : memref<8x128xf32, #tpu.memory_space<vmem>>, vector<8x128xf32>
      tpu.vector_store %arg4[%c0_26, %c0_27], %43 {strides = array<i32>} : memref<8x128xf32, #tpu.memory_space<vmem>>, vector<8x128xf32>,
      %cst_28 = arith.constant 0.000000e+00 : f32
      %45 = vector.broadcast %cst_28 : f32 to vector<8x128xf32>
      %c0_29 = arith.constant 0 : index
      %c0_30 = arith.constant 0 : index
      %46 = vector.load %arg5[%c0_29, %c0_30] : memref<8x128xf32, #tpu.memory_space<vmem>>, vector<8x128xf32>
      tpu.vector_store %arg5[%c0_29, %c0_30], %45 {strides = array<i32>} : memref<8x128xf32, #tpu.memory_space<vmem>>, vector<8x128xf32>,
      %cst_31 = arith.constant 0.000000e+00 : f32
      %47 = vector.broadcast %cst_31 : f32 to vector<8x128xf32>
      %c0_32 = arith.constant 0 : index
      %c0_33 = arith.constant 0 : index
      %48 = vector.load %arg6[%c0_32, %c0_33] : memref<8x128xf32, #tpu.memory_space<vmem>>, vector<8x128xf32>
      tpu.vector_store %arg6[%c0_32, %c0_33], %47 {strides = array<i32>} : memref<8x128xf32, #tpu.memory_space<vmem>>, vector<8x128xf32>,
    } else {
    }
    %c0 = arith.constant 0 : index
    %c0_1 = arith.constant 0 : index
    %3 = vector.load %arg1[%c0, %c0_1] : memref<16x128xf32, #tpu.memory_space<vmem>>, vector<16x128xf32>
    %c0_2 = arith.constant 0 : index
    %c0_3 = arith.constant 0 : index
    %4 = vector.load %arg2[%c0_2, %c0_3] : memref<16x128xf32, #tpu.memory_space<vmem>>, vector<16x128xf32>
    %5 = math.absf %3 : vector<16x128xf32>
    %cst = arith.constant 0.000000e+00 : f32
    %6 = vector.broadcast %cst : f32 to vector<16x128xf32>
    %7 = arith.subf %6, %5 : vector<16x128xf32>
    %8 = math.exp %7 : vector<16x128xf32>
    %cst_4 = arith.constant 1.000000e+00 : f32
    %9 = vector.broadcast %cst_4 : f32 to vector<16x128xf32>
    %10 = arith.addf %9, %8 : vector<16x128xf32>
    %cst_5 = arith.constant 1.000000e+00 : f32
    %11 = vector.broadcast %cst_5 : f32 to vector<16x128xf32>
    %12 = arith.divf %11, %10 : vector<16x128xf32>
    %cst_6 = arith.constant 0.000000e+00 : f32
    %13 = vector.broadcast %cst_6 : f32 to vector<16x128xf32>
    %14 = arith.cmpf oge, %3, %13 : vector<16x128xf32>
    %15 = arith.mulf %8, %12 : vector<16x128xf32>
    %16 = arith.select %14, %12, %15 : vector<16x128xi1>, vector<16x128xf32>
    %cst_7 = arith.constant 0.000000e+00 : f32
    %17 = vector.broadcast %cst_7 : f32 to vector<16x128xf32>
    %18 = arith.maximumf %3, %17 : vector<16x128xf32>
    %19 = arith.mulf %3, %4 : vector<16x128xf32>
    %20 = arith.subf %18, %19 : vector<16x128xf32>
    %21 = math.log1p %8 : vector<16x128xf32>
    %22 = arith.addf %20, %21 : vector<16x128xf32>
    %23 = arith.mulf %16, %4 : vector<16x128xf32>
    %24 = arith.addf %16, %4 : vector<16x128xf32>
    %c0_8 = arith.constant 0 : index
    %c0_9 = arith.constant 0 : index
    %25 = vector.load %arg4[%c0_8, %c0_9] : memref<8x128xf32, #tpu.memory_space<vmem>>, vector<8x128xf32>
    %26 = vector.shape_cast %23 : vector<16x128xf32> to vector<2x8x128xf32>
    %cst_10 = arith.constant dense<0.000000e+00> : vector<8x128xf32>
    %27 = vector.multi_reduction <add>, %26, %cst_10 [0] : vector<2x8x128xf32> to vector<8x128xf32>
    %28 = arith.addf %25, %27 : vector<8x128xf32>
    %c0_11 = arith.constant 0 : index
    %c0_12 = arith.constant 0 : index
    %29 = vector.load %arg4[%c0_11, %c0_12] : memref<8x128xf32, #tpu.memory_space<vmem>>, vector<8x128xf32>
    tpu.vector_store %arg4[%c0_11, %c0_12], %28 {strides = array<i32>} : memref<8x128xf32, #tpu.memory_space<vmem>>, vector<8x128xf32>,
    %c0_13 = arith.constant 0 : index
    %c0_14 = arith.constant 0 : index
    %30 = vector.load %arg5[%c0_13, %c0_14] : memref<8x128xf32, #tpu.memory_space<vmem>>, vector<8x128xf32>
    %31 = vector.shape_cast %24 : vector<16x128xf32> to vector<2x8x128xf32>
    %cst_15 = arith.constant dense<0.000000e+00> : vector<8x128xf32>
    %32 = vector.multi_reduction <add>, %31, %cst_15 [0] : vector<2x8x128xf32> to vector<8x128xf32>
    %33 = arith.addf %30, %32 : vector<8x128xf32>
    %c0_16 = arith.constant 0 : index
    %c0_17 = arith.constant 0 : index
    %34 = vector.load %arg5[%c0_16, %c0_17] : memref<8x128xf32, #tpu.memory_space<vmem>>, vector<8x128xf32>
    tpu.vector_store %arg5[%c0_16, %c0_17], %33 {strides = array<i32>} : memref<8x128xf32, #tpu.memory_space<vmem>>, vector<8x128xf32>,
    %c0_18 = arith.constant 0 : index
    %c0_19 = arith.constant 0 : index
    %35 = vector.load %arg6[%c0_18, %c0_19] : memref<8x128xf32, #tpu.memory_space<vmem>>, vector<8x128xf32>
    %36 = vector.shape_cast %22 : vector<16x128xf32> to vector<2x8x128xf32>
    %cst_20 = arith.constant dense<0.000000e+00> : vector<8x128xf32>
    %37 = vector.multi_reduction <add>, %36, %cst_20 [0] : vector<2x8x128xf32> to vector<8x128xf32>
    %38 = arith.addf %35, %37 : vector<8x128xf32>
    %c0_21 = arith.constant 0 : index
    %c0_22 = arith.constant 0 : index
    %39 = vector.load %arg6[%c0_21, %c0_22] : memref<8x128xf32, #tpu.memory_space<vmem>>, vector<8x128xf32>
    tpu.vector_store %arg6[%c0_21, %c0_22], %38 {strides = array<i32>} : memref<8x128xf32, #tpu.memory_space<vmem>>, vector<8x128xf32>,
    %c0_i32_23 = arith.constant 0 : i32
    %40 = arith.cmpi eq, %arg0, %c0_i32_23 : i32
    %41 = arith.extui %40 : i1 to i32
    %c0_i32_24 = arith.constant 0 : i32
    %42 = arith.cmpi ne, %41, %c0_i32_24 : i32
    scf.if %42 {
      %c0_25 = arith.constant 0 : index
      %c0_26 = arith.constant 0 : index
      %43 = vector.load %arg4[%c0_25, %c0_26] : memref<8x128xf32, #tpu.memory_space<vmem>>, vector<8x128xf32>
      %44 = vector.shape_cast %43 : vector<8x128xf32> to vector<1x8x128xf32>
      %cst_27 = arith.constant dense<0.000000e+00> : vector<1xf32>
      %45 = vector.multi_reduction <add>, %44, %cst_27 [1, 2] : vector<1x8x128xf32> to vector<1xf32>
      %46 = vector.shape_cast %45 : vector<1xf32> to vector<1x1x1xf32>
      %47 = vector.extract %46[0, 0, 0] : f32 from vector<1x1x1xf32>
      %48 = vector.broadcast %47 : f32 to vector<1x1xf32>
      %c0_28 = arith.constant 0 : index
      %c0_29 = arith.constant 0 : index
      %49 = vector.load %arg5[%c0_28, %c0_29] : memref<8x128xf32, #tpu.memory_space<vmem>>, vector<8x128xf32>
      %50 = vector.shape_cast %49 : vector<8x128xf32> to vector<1x8x128xf32>
      %cst_30 = arith.constant dense<0.000000e+00> : vector<1xf32>
      %51 = vector.multi_reduction <add>, %50, %cst_30 [1, 2] : vector<1x8x128xf32> to vector<1xf32>
      %52 = vector.shape_cast %51 : vector<1xf32> to vector<1x1x1xf32>
      %53 = vector.extract %52[0, 0, 0] : f32 from vector<1x1x1xf32>
      %54 = vector.broadcast %53 : f32 to vector<1x1xf32>
      %c0_31 = arith.constant 0 : index
      %c0_32 = arith.constant 0 : index
      %55 = vector.load %arg6[%c0_31, %c0_32] : memref<8x128xf32, #tpu.memory_space<vmem>>, vector<8x128xf32>
      %56 = vector.shape_cast %55 : vector<8x128xf32> to vector<1x8x128xf32>
      %cst_33 = arith.constant dense<0.000000e+00> : vector<1xf32>
      %57 = vector.multi_reduction <add>, %56, %cst_33 [1, 2] : vector<1x8x128xf32> to vector<1xf32>
      %58 = vector.shape_cast %57 : vector<1xf32> to vector<1x1x1xf32>
      %59 = vector.extract %58[0, 0, 0] : f32 from vector<1x1x1xf32>
      %60 = vector.broadcast %59 : f32 to vector<1x1xf32>
      %cst_34 = arith.constant 2.000000e+00 : f32
      %61 = vector.broadcast %cst_34 : f32 to vector<1x1xf32>
      %62 = arith.mulf %61, %48 : vector<1x1xf32>
      %cst_35 = arith.constant 1.000000e-07 : f32
      %63 = vector.broadcast %cst_35 : f32 to vector<1x1xf32>
      %64 = arith.addf %54, %63 : vector<1x1xf32>
      %65 = arith.divf %62, %64 : vector<1x1xf32>
      %cst_36 = arith.constant 4.8828125E-4 : f32
      %66 = vector.broadcast %cst_36 : f32 to vector<1x1xf32>
      %67 = arith.mulf %60, %66 : vector<1x1xf32>
      %cst_37 = arith.constant 1.000000e+00 : f32
      %68 = vector.broadcast %cst_37 : f32 to vector<1x1xf32>
      %69 = arith.subf %68, %65 : vector<1x1xf32>
      %70 = arith.addf %67, %69 : vector<1x1xf32>
      %c0_38 = arith.constant 0 : index
      %c0_39 = arith.constant 0 : index
      %71 = vector.load %arg3[%c0_38, %c0_39] : memref<1x1xf32, #tpu.memory_space<vmem>>, vector<1x1xf32>
      tpu.vector_store %arg3[%c0_38, %c0_39], %70 {strides = array<i32>} : memref<1x1xf32, #tpu.memory_space<vmem>>, vector<1x1xf32>,
    } else {
    }
    return
  }
  func.func @transform_0(%arg0: i32) -> (i32, i32) {
    %c0_i32 = arith.constant 0 : i32
    %c0_i32_0 = arith.constant 0 : i32
    return %arg0, %c0_i32 : i32, i32
  }
  func.func @transform_1(%arg0: i32) -> (i32, i32) {
    %c0_i32 = arith.constant 0 : i32
    %c0_i32_0 = arith.constant 0 : i32
    return %arg0, %c0_i32 : i32, i32
  }
  func.func @transform_2(%arg0: i32) -> (i32, i32) {
    %c0_i32 = arith.constant 0 : i32
    %c0_i32_0 = arith.constant 0 : i32
    %c0_i32_1 = arith.constant 0 : i32
    return %c0_i32, %c0_i32_0 : i32, i32
  }
}

</mosaic_0001>

<llo_original>
// kernel: tpu_custom_call.1
$region0: #{tpu_custom_call.1}
  #allocation0 [shape = 'u32[]', space=smem, size = 0x4, offset = 0x4, fixed_abs, tag = 'smem constant byte address 0x4 - core index']
  #allocation1 [shape = 'u32[72,128]{1,0:T(1,128)}', space=vmem, size = 0x9000, scoped, tag = 'internal scratch']
  #allocation2 [shape = 'f32[8,128]{1,0:T(8,128)}', space=vmem, size = 0x1000, scoped, tag = 'scratch operand']
  #allocation3 [shape = 'f32[8,128]{1,0:T(8,128)}', space=vmem, size = 0x1000, scoped, tag = 'scratch operand']
  #allocation4 [shape = 'f32[8,128]{1,0:T(8,128)}', space=vmem, size = 0x1000, scoped, tag = 'scratch operand']
  %s0 = inlined_call_operand.hbm [shape: f32[16,128], index: 0, kind: input, shape index: {}]
  %s1 = inlined_call_operand.hbm [shape: f32[16,128], index: 1, kind: input, shape index: {}]
  %s2 = inlined_call_operand.hbm [shape: f32[1,1], index: 2, kind: output, shape index: {}]
  %s3 = sld [smem:[#allocation0]]
  $region34: #{tpu_custom_call.1} parent=0
    _
  %s5 = ssub.s32 1, %s3
  %s6 = scalar_select 0, %s5, %s3
  $region1: #{tpu_custom_call.1} parent=0
    #allocation5 [shape = 'u8[8192]{0}', space=vmem, size = 0x2000, scoped, tag = 'input window, operand 0, single buffered']
    #allocation6 [shape = 's32[1]{0}', space=sflag, size = 0x4, scoped, tag = 'scoped memory for tpu_custom_call.1']
    #allocation7 [shape = 's32[1]{0}', space=sflag, size = 0x4, scoped, tag = 'scoped memory for tpu_custom_call.1']
    #allocation8 [shape = 'u8[8192]{0}', space=vmem, size = 0x2000, scoped, tag = 'input window, operand 1, single buffered']
    #allocation9 [shape = 's32[1]{0}', space=sflag, size = 0x4, scoped, tag = 'scoped memory for tpu_custom_call.1']
    #allocation10 [shape = 'u8[512]{0}', space=vmem, size = 0x400, scoped, tag = 'output window, operand 0, single buffered']
    %7 = vsyncpa [#allocation6], 0
    %8 = vsyncpa [#allocation9], 0
    %9 = vsyncpa [#allocation7], 0
    // Predicated region
    $region2: #{tpu_custom_call.1} parent=1 // pred_check
      _
    $region3: #{tpu_custom_call.1} parent=1 // pred_check_branch
      %11 = sbr.rel (0) target = $region5
    $region4: #{tpu_custom_call.1} parent=1 // pred_region
      %13 = vsyncadd [#allocation6], 0
      %s14 = sshll.u32 %s0, 4
      %s15 = int_to_ptr.hbm [resolvable:$true] %s14
      %s16 = sshll.u32 [#allocation5], 4
      %s17 = int_to_ptr.vmem [resolvable:$true] %s16
      %22 = dma.hbm_to_vmem [thread:$0]  %s15, 256, %s17, [#allocation6], 128, 128, 8
    $region5: #{tpu_custom_call.1} parent=1 // pred_fallthru
      _
    // Predicated region
    $region6: #{tpu_custom_call.1} parent=1 // pred_check
      _
    $region7: #{tpu_custom_call.1} parent=1 // pred_check_branch
      %24 = sbr.rel (0) target = $region9
    $region8: #{tpu_custom_call.1} parent=1 // pred_region
      %26 = vsyncadd [#allocation9], 0
      %s27 = sshll.u32 %s1, 4
      %s28 = int_to_ptr.hbm [resolvable:$true] %s27
      %s29 = sshll.u32 [#allocation8], 4
      %s30 = int_to_ptr.vmem [resolvable:$true] %s29
      %35 = dma.hbm_to_vmem [thread:$0]  %s28, 256, %s30, [#allocation9], 128, 128, 8
    $region9: #{tpu_custom_call.1} parent=1 // pred_fallthru
      _
    // Predicated region
    $region10: #{tpu_custom_call.1} parent=1 // pred_check
      _
    $region11: #{tpu_custom_call.1} parent=1 // pred_check_branch
      %37 = sbr.rel (0) target = $region13
    $region12: #{tpu_custom_call.1} parent=1 // pred_region
      %39 = dma.done [#allocation6], 256
    $region13: #{tpu_custom_call.1} parent=1 // pred_fallthru
      _
    // Predicated region
    $region14: #{tpu_custom_call.1} parent=1 // pred_check
      _
    $region15: #{tpu_custom_call.1} parent=1 // pred_check_branch
      %41 = sbr.rel (0) target = $region17
    $region16: #{tpu_custom_call.1} parent=1 // pred_region
      %43 = dma.done [#allocation9], 256
    $region17: #{tpu_custom_call.1} parent=1 // pred_fallthru
      _
    %p44 = scmp.eq.s32.totalorder 0, 0
    // Predicated region
    $region18: #{tpu_custom_call.1} parent=1 // pred_check
      %p45 = pneg %p44
    $region19: #{tpu_custom_call.1} parent=1 // pred_check_branch
      %47 = sbr.rel (%p45) target = $region21
    $region20: #{tpu_custom_call.1} parent=1 // pred_region
      %48 = vst [vmem:[#allocation2] sm:$0xff] 0.0
      %49 = vst [vmem:[#allocation3] sm:$0xff] 0.0
      %50 = vst [vmem:[#allocation4] sm:$0xff] 0.0
    $region21: #{tpu_custom_call.1} parent=1 // pred_fallthru
      _
    %v51 = vld [vmem:[#allocation5] sm:$0xff]
    %v52 = vld [vmem:[#allocation5 + $0x8] sm:$0xff]
    %v53 = vld [vmem:[#allocation8] sm:$0xff]
    %v54 = vld [vmem:[#allocation8 + $0x8] sm:$0xff]
    %v55 = vand.u32 2147483647, %v51
    %v56 = vand.u32 2147483647, %v52
    %v57 = vsub.f32 0.0, %v55
    %v58 = vsub.f32 0.0, %v56
    %v59 = vmul.f32 %v57, 1.442695
    %v60 = vpow.pop %v59
    %v61 = vmul.f32 %v58, 1.442695
    %v62 = vpow.pop %v61
    %v63 = vadd.f32 %v60, 1.0
    %v64 = vadd.f32 %v62, 1.0
    %v65 = vrcp.pop %v63
    %v66 = vmul.f32 %v63, %v65
    %v67 = vsub.f32 1.0, %v66
    %v68 = vmul.f32 %v65, %v67
    %v69 = vadd.f32 %v65, %v68
    %vm70 = vweird.f32 %v63
    %vm71 = vweird.f32 %v65
    %vm72 = vmor %vm70, %vm71
    %v73 = vsel %vm72, %v65, %v69
    %v74 = vand.u32 2147483647, %v63
    %vm75 = vcmp.eq.f32.partialorder %v74, 8.507059e+37
    %v76 = vand.u32 %v63, 2147483648
    %v77 = vor.u32 1.1754944e-38, %v76
    %v78 = vsel %vm75, %v77, %v73
    %v79 = vmul.f32 1.0, %v78
    %v80 = vrcp.pop %v64
    %v81 = vmul.f32 %v64, %v80
    %v82 = vsub.f32 1.0, %v81
    %v83 = vmul.f32 %v80, %v82
    %v84 = vadd.f32 %v80, %v83
    %vm85 = vweird.f32 %v64
    %vm86 = vweird.f32 %v80
    %vm87 = vmor %vm85, %vm86
    %v88 = vsel %vm87, %v80, %v84
    %v89 = vand.u32 2147483647, %v64
    %vm90 = vcmp.eq.f32.partialorder %v89, 8.507059e+37
    %v91 = vand.u32 %v64, 2147483648
    %v92 = vor.u32 1.1754944e-38, %v91
    %v93 = vsel %vm90, %v92, %v88
    %v94 = vmul.f32 1.0, %v93
    %vm95 = vcmp.ge.f32.partialorder %v51, 0.0
    %vm96 = vcmp.ge.f32.partialorder %v52, 0.0
    %v97 = vmul.f32 %v60, %v79
    %v98 = vmul.f32 %v62, %v94
    %v99 = vsel %vm95, %v79, %v97
    %v100 = vsel %vm96, %v94, %v98
    %v101 = vmax.f32 %v51, 0.0
    %v102 = vmax.f32 %v52, 0.0
    %v103 = vmul.f32 %v51, %v53
    %v104 = vmul.f32 %v52, %v54
    %v105 = vsub.f32 %v101, %v103
    %v106 = vsub.f32 %v102, %v104
    %v107 = vadd.f32 %v60, 1.0
    %v108 = vlog2.pop %v107
    %v109 = vmul.f32 %v108, 0.6931472
    %v110 = vmul.f32 -0.5, %v60
    %v111 = vadd.f32 %v110, 1.0
    %v112 = vmul.f32 %v111, %v60
    %v113 = vand.u32 2147483647, %v60
    %vm114 = vcmp.lt.f32.partialorder %v113, 0.0004427343
    %v115 = vsel %vm114, %v112, %v109
    %v116 = vadd.f32 %v62, 1.0
    %v117 = vlog2.pop %v116
    %v118 = vmul.f32 %v117, 0.6931472
    %v119 = vmul.f32 -0.5, %v62
    %v120 = vadd.f32 %v119, 1.0
    %v121 = vmul.f32 %v120, %v62
    %v122 = vand.u32 2147483647, %v62
    %vm123 = vcmp.lt.f32.partialorder %v122, 0.0004427343
    %v124 = vsel %vm123, %v121, %v118
    %v125 = vadd.f32 %v105, %v115
    %v126 = vadd.f32 %v106, %v124
    %v127 = vmul.f32 %v99, %v53
    %v128 = vmul.f32 %v100, %v54
    %v129 = vadd.f32 %v99, %v53
    %v130 = vadd.f32 %v100, %v54
    %v131 = vld [vmem:[#allocation2] sm:$0xff]
    %v132 = vadd.f32 %v127, %v128
    %v133 = vadd.f32 %v131, %v132
    %134 = vst [vmem:[#allocation2] sm:$0xff] %v133
    %v135 = vld [vmem:[#allocation3] sm:$0xff]
    %v136 = vadd.f32 %v129, %v130
    %v137 = vadd.f32 %v135, %v136
    %138 = vst [vmem:[#allocation3] sm:$0xff] %v137
    %v139 = vld [vmem:[#allocation4] sm:$0xff]
    %v140 = vadd.f32 %v125, %v126
    %v141 = vadd.f32 %v139, %v140
    %142 = vst [vmem:[#allocation4] sm:$0xff] %v141
    // Predicated region
    $region22: #{tpu_custom_call.1} parent=1 // pred_check
      %p143 = pneg %p44
    $region23: #{tpu_custom_call.1} parent=1 // pred_check_branch
      %145 = sbr.rel (%p143) target = $region25
    $region24: #{tpu_custom_call.1} parent=1 // pred_region
      %v146 = vld [vmem:[#allocation2] sm:$0xff]
      %147 = vadd.xlane.f32.xlu0 %v146
      %v148 = vpop.xlane.xlu0 %147
      %v149 = vrot.slane %v148, 4
      %v150 = vadd.f32 %v148, %v149
      %v151 = vrot.slane %v150, 2
      %v152 = vadd.f32 %v150, %v151
      %v153 = vrot.slane %v152, 1
      %v154 = vadd.f32 %v152, %v153
      %s155 = vtos %v154
      %v156 = vstv %s155
      %v157 = vld [vmem:[#allocation3] sm:$0xff]
      %158 = vadd.xlane.f32.xlu0 %v157
      %v159 = vpop.xlane.xlu0 %158
      %v160 = vrot.slane %v159, 4
      %v161 = vadd.f32 %v159, %v160
      %v162 = vrot.slane %v161, 2
      %v163 = vadd.f32 %v161, %v162
      %v164 = vrot.slane %v163, 1
      %v165 = vadd.f32 %v163, %v164
      %s166 = vtos %v165
      %v167 = vstv %s166
      %v168 = vld [vmem:[#allocation4] sm:$0xff]
      %169 = vadd.xlane.f32.xlu0 %v168
      %v170 = vpop.xlane.xlu0 %169
      %v171 = vrot.slane %v170, 4
      %v172 = vadd.f32 %v170, %v171
      %v173 = vrot.slane %v172, 2
      %v174 = vadd.f32 %v172, %v173
      %v175 = vrot.slane %v174, 1
      %v176 = vadd.f32 %v174, %v175
      %s177 = vtos %v176
      %v178 = vstv %s177
      %v179 = vmul.f32 %v156, 2.0
      %v180 = vadd.f32 %v167, 1e-07
      %v181 = vrcp.pop %v180
      %v182 = vmul.f32 %v180, %v181
      %v183 = vsub.f32 1.0, %v182
      %v184 = vmul.f32 %v181, %v183
      %v185 = vadd.f32 %v181, %v184
      %vm186 = vweird.f32 %v180
      %vm187 = vweird.f32 %v181
      %vm188 = vmor %vm186, %vm187
      %v189 = vsel %vm188, %v181, %v185
      %v190 = vand.u32 2147483647, %v180
      %vm191 = vcmp.eq.f32.partialorder %v190, 8.507059e+37
      %v192 = vand.u32 %v180, 2147483648
      %v193 = vor.u32 1.1754944e-38, %v192
      %v194 = vsel %vm191, %v193, %v189
      %v195 = vmul.f32 %v179, %v194
      %v196 = vmul.f32 %v178, 0.00048828125
      %v197 = vsub.f32 1.0, %v195
      %v198 = vadd.f32 %v196, %v197
      %vm199 = vcmask 0
      %200 = vst.msk [vmem:[#allocation10] sm:$0x1] %vm199, %v198
    $region25: #{tpu_custom_call.1} parent=1 // pred_fallthru
      _
    // Predicated region
    $region26: #{tpu_custom_call.1} parent=1 // pred_check
      _
    $region27: #{tpu_custom_call.1} parent=1 // pred_check_branch
      %202 = sbr.rel (0) target = $region29
    $region28: #{tpu_custom_call.1} parent=1 // pred_region
      %204 = vsyncadd [#allocation7], 0
      %s206 = sshll.u32 [#allocation10], 4
      %s207 = int_to_ptr.vmem [resolvable:$true] %s206
      %s208 = sshll.u32 %s2, 4
      %s209 = int_to_ptr.hbm [resolvable:$true] %s208
      %211 = dma.vmem_to_hbm [thread:$0]  %s207, 16, %s209, [#allocation7]
    $region29: #{tpu_custom_call.1} parent=1 // pred_fallthru
      _
    // Predicated region
    $region30: #{tpu_custom_call.1} parent=1 // pred_check
      _
    $region31: #{tpu_custom_call.1} parent=1 // pred_check_branch
      %213 = sbr.rel (0) target = $region33
    $region32: #{tpu_custom_call.1} parent=1 // pred_region
      %215 = dma.done [#allocation7], 16
    $region33: #{tpu_custom_call.1} parent=1 // pred_fallthru
      _
    %216 = vsyncpa [#allocation6], 1
    %217 = vsyncpa [#allocation9], 1
    %218 = vsyncpa [#allocation7], 1

</llo_original>
